<compile_context>
chip_gen: v7x
topology: tpu7x:2x2x1
jax: 0.10.0
libtpu: 0.0.40
codegen_flags: <defaults>
</compile_context>

<pallas_src>
import math

import jax
import jax.numpy as jnp
from jax import lax
from jax.experimental import pallas as pl
from jax.experimental.pallas import tpu as pltpu

M2 = 1.0          # mass^2 of the synthetic action
LAM = 0.1         # quartic coupling of the synthetic action
LOG_2PI = 1.8378770664093453


def _round_up(x, m):
    return ((x + m - 1) // m) * m


def _make_kernel(batch_actual, tile_b, L):
    """Build the FastPath kernel for a given (static) batch size / tile size."""
    needs_mask = (batch_actual % tile_b) != 0
    base_const = -0.5 * L * LOG_2PI

    def kernel(z_ref, s_ref, b_ref, logw_ref, act_ref, gpart_ref):
        z = z_ref[...]                      # (tile_b, L) f32
        s = s_ref[...]                      # (1, L)
        bias = b_ref[...]                   # (1, L)

        # ---- base log prob and its gradient (initial_px, dlogqdx) ----
        lq0x = -0.5 * jnp.sum(z * z, axis=-1, keepdims=True) + base_const      # (tile_b,1)

        # ---- piggy_back_forward: elementwise affine flow ----
        es = jnp.exp(s)
        x = es * z + bias                                                       # (tile_b,L)
        delta_trans = -jnp.sum(s, axis=-1, keepdims=True)                       # (1,1)
        dlogq_dx = (-z) * pl.reciprocal(es)                                     # = -z*exp(-s)

        # ---- action on transformed samples and d(action)/dx (sign = -1) ----
        x2 = x * x
        actions = jnp.sum(x2 * (0.5 * M2 + LAM * x2), axis=-1, keepdims=True)   # (tile_b,1)
        dA_dx = x * (M2 + (4.0 * LAM) * x2)                                     # (tile_b,L)

        # ---- assemble loss pieces ----
        log_q = lq0x + delta_trans                  # lq0x - sign*delta_trans, sign = -1
        logw_ref[...] = -(actions + log_q)          # log importance weights
        act_ref[...] = actions

        # per-block partial of grad_term = sum(x * (dlogq_dx + dA_dx)); /B in wrapper.
        row_g = jnp.sum(x * (dlogq_dx + dA_dx), axis=-1, keepdims=True)         # (tile_b,1)
        if needs_mask:  # static: only when the batch was zero-padded to a tile multiple
            rows = (pl.program_id(0) * tile_b
                    + lax.broadcasted_iota(jnp.int32, (tile_b, 1), 0))
            row_g = jnp.where(rows < batch_actual, row_g, 0.0)
        gpart = jnp.sum(row_g)
        # lane-dense (unmasked) store of the scalar partial; wrapper reads [:, 0, 0].
        gpart_ref[...] = jnp.full(gpart_ref.shape, gpart, jnp.float32)

    return kernel


def fastpath_forward(samples, s, b, *, target_block_bytes=4 * 1024 * 1024):
    """samples: (B, *lat_shape) float32; s, b: (L,) flow parameters."""
    B = samples.shape[0]
    L = int(math.prod(samples.shape[1:]))
    z = samples.reshape(B, L).astype(jnp.float32)
    s2 = s.reshape(1, L).astype(jnp.float32)
    b2 = b.reshape(1, L).astype(jnp.float32)

    # ~4 MiB of z per block (fits comfortably under the 32 MiB scoped VMEM budget
    # when double-buffered, safe on v7x's 64 MiB VMEM), multiple of 8 sublanes.
    tile_b = (target_block_bytes // (4 * L)) // 8 * 8
    tile_b = max(8, min(tile_b, _round_up(B, 8)))
    b_pad = _round_up(B, tile_b)
    if b_pad != B:
        z = jnp.pad(z, ((0, b_pad - B), (0, 0)))
    num_tiles = b_pad // tile_b

    kernel = _make_kernel(B, tile_b, L)

    cost = pl.CostEstimate(
        flops=15 * b_pad * L,
        transcendentals=L,
        bytes_accessed=4 * (b_pad * L + 2 * L + 2 * b_pad + num_tiles * 8 * 128),
    )

    logw, act, gpart = pl.pallas_call(
        kernel,
        out_shape=(
            jax.ShapeDtypeStruct((b_pad, 1), jnp.float32),
            jax.ShapeDtypeStruct((b_pad, 1), jnp.float32),
            jax.ShapeDtypeStruct((num_tiles, 8, 128), jnp.float32),
        ),
        grid=(num_tiles,),
        in_specs=[
            pl.BlockSpec((tile_b, L), lambda i: (i, 0)),
            pl.BlockSpec((1, L), lambda i: (0, 0)),   # resident across grid steps
            pl.BlockSpec((1, L), lambda i: (0, 0)),   # resident across grid steps
        ],
        out_specs=(
            pl.BlockSpec((tile_b, 1), lambda i: (i, 0)),
            pl.BlockSpec((tile_b, 1), lambda i: (i, 0)),
            pl.BlockSpec((1, 8, 128), lambda i: (i, 0, 0)),
        ),
        compiler_params=pltpu.CompilerParams(
            dimension_semantics=("parallel",),        # shard batch tiles across TCs (v7x)
            vmem_limit_bytes=32 * 1024 * 1024,
        ),
        cost_estimate=cost,
    )(z, s2, b2)

    log_weights = logw[:B, 0]
    actions = act[:B, 0]
    g = jnp.sum(gpart[:, 0, 0]) * (1.0 / B)

    # reverse KL: sign = -1 ;  grad_term - grad_term.detach() == 0 in value
    loss_mean = -jnp.mean(log_weights) + (g - lax.stop_gradient(g))
    # TODO(synk): for use as a *gradient* estimator, wrap the pallas_call in a
    # jax.custom_vjp (backward can reuse the closed-form dlogq_dx / dA_dx).
    return loss_mean, log_weights, actions


def fastpath_reference(samples, s, b):
    """Pure-JAX reference of the same math, for a correctness check."""
    B = samples.shape[0]
    L = int(math.prod(samples.shape[1:]))
    z = samples.reshape(B, L).astype(jnp.float32)
    s = s.reshape(1, L)
    b = b.reshape(1, L)
    lq0x = -0.5 * jnp.sum(z * z, axis=-1) - 0.5 * L * LOG_2PI
    x = jnp.exp(s) * z + b
    delta_trans = -jnp.sum(s)
    dlogq_dx = (-z) * jnp.exp(-s)
    x2 = x * x
    actions = jnp.sum(0.5 * M2 * x2 + LAM * x2 * x2, axis=-1)
    dA_dx = M2 * x + 4.0 * LAM * x2 * x
    log_q = lq0x + delta_trans
    dLdx = (dlogq_dx + dA_dx) / B
    log_w = -(actions + log_q)
    g = jnp.sum(x * dLdx)
    loss = -jnp.mean(log_w) + (g - lax.stop_gradient(g))
    return loss, log_w, actions


def _check(samples, s_param, b_param, **kw):
    loss, log_weights, actions = fastpath_forward(samples, s_param, b_param, **kw)
    jax.block_until_ready((loss, log_weights, actions))
    loss_r, logw_r, act_r = fastpath_reference(samples, s_param, b_param)
    assert jnp.allclose(loss, loss_r, rtol=1e-5, atol=1e-5)
    assert jnp.allclose(log_weights, logw_r, rtol=1e-5, atol=1e-5)
    assert jnp.allclose(actions, act_r, rtol=1e-5, atol=1e-5)


if __name__ == "__main__":
    key = jax.random.PRNGKey(0)
    k_z, k_s, k_b, k_z2 = jax.random.split(key, 4)

    # --- case 1: single-tile path (matches the module's small config) ---
    batch_size = 8
    lat_shape = (16, 16)
    L = lat_shape[0] * lat_shape[1]
    samples = jax.random.normal(k_z, (batch_size, *lat_shape), dtype=jnp.float32)
    s_param = 0.05 * jax.random.normal(k_s, (L,), dtype=jnp.float32)
    b_param = 0.10 * jax.random.normal(k_b, (L,), dtype=jnp.float32)
    _check(samples, s_param, b_param)

    # --- case 2: multi-tile / padded-batch path (exercises grid + parallel semantics) ---
    batch2 = 20
    lat2 = (8, 16)
    L2 = lat2[0] * lat2[1]
    samples2 = jax.random.normal(k_z2, (batch2, *lat2), dtype=jnp.float32)
    s_param2 = 0.05 * jax.random.normal(k_s, (L2,), dtype=jnp.float32)
    b_param2 = 0.10 * jax.random.normal(k_b, (L2,), dtype=jnp.float32)
    # tiny target block forces tile_b=8 -> 3 grid steps with a padded last tile
    _check(samples2, s_param2, b_param2, target_block_bytes=4096)

    # TODO(synk): the abstract sampler/Action of the PyTorch module are replaced by a
    # concrete elementwise-affine flow + phi^4-style action; the autograd.grad calls are
    # replaced by their closed-form gradients computed inside the kernel.
    print("KERNEL_OK")
</pallas_src>

<mosaic_0001>
module attributes {stable_mosaic.version = 11 : i64} {
  func.func @kernel(%arg0: i32, %arg1: memref<8x256xf32, #tpu.memory_space<vmem>>, %arg2: memref<1x256xf32, #tpu.memory_space<vmem>>, %arg3: memref<1x256xf32, #tpu.memory_space<vmem>>, %arg4: memref<8x1xf32, #tpu.memory_space<vmem>>, %arg5: memref<8x1xf32, #tpu.memory_space<vmem>>, %arg6: memref<1x8x128xf32, #tpu.memory_space<vmem>>) attributes {dimension_semantics = [#tpu.dimension_semantics<parallel>], iteration_bounds = array<i64: 1>, scalar_prefetch = 0 : i64, scratch_operands = 0 : i64, tpu.core_type = #tpu.core_type<tc>, window_params = [{transform_indices = @transform_0, window_bounds = array<i64: 8, 256>}, {pipeline_mode = #tpu.pipeline_mode<synchronous>, transform_indices = @transform_1, window_bounds = array<i64: 1, 256>}, {pipeline_mode = #tpu.pipeline_mode<synchronous>, transform_indices = @transform_2, window_bounds = array<i64: 1, 256>}, {transform_indices = @transform_3, window_bounds = array<i64: 8, 1>}, {transform_indices = @transform_4, window_bounds = array<i64: 8, 1>}, {transform_indices = @transform_5, window_bounds = array<i64: 1, 8, 128>}]} {
    %c0 = arith.constant 0 : index
    %c0_0 = arith.constant 0 : index
    %0 = vector.load %arg1[%c0, %c0_0] : memref<8x256xf32, #tpu.memory_space<vmem>>, vector<8x256xf32>
    %c0_1 = arith.constant 0 : index
    %c0_2 = arith.constant 0 : index
    %1 = vector.load %arg2[%c0_1, %c0_2] : memref<1x256xf32, #tpu.memory_space<vmem>>, vector<1x256xf32>
    %c0_3 = arith.constant 0 : index
    %c0_4 = arith.constant 0 : index
    %2 = vector.load %arg3[%c0_3, %c0_4] : memref<1x256xf32, #tpu.memory_space<vmem>>, vector<1x256xf32>
    %3 = arith.mulf %0, %0 : vector<8x256xf32>
    %cst = arith.constant dense<0.000000e+00> : vector<8xf32>
    %4 = vector.multi_reduction <add>, %3, %cst [1] : vector<8x256xf32> to vector<8xf32>
    %5 = vector.shape_cast %4 : vector<8xf32> to vector<8x1xf32>
    %cst_5 = arith.constant -5.000000e-01 : f32
    %6 = vector.broadcast %cst_5 : f32 to vector<8x1xf32>
    %7 = arith.mulf %6, %5 : vector<8x1xf32>
    %cst_6 = arith.constant -235.24826 : f32
    %8 = vector.broadcast %cst_6 : f32 to vector<8x1xf32>
    %9 = arith.addf %7, %8 : vector<8x1xf32>
    %10 = math.exp %1 : vector<1x256xf32>
    %11 = vector.broadcast %10 : vector<1x256xf32> to vector<8x256xf32>
    %12 = arith.mulf %11, %0 : vector<8x256xf32>
    %13 = vector.broadcast %2 : vector<1x256xf32> to vector<8x256xf32>
    %14 = arith.addf %12, %13 : vector<8x256xf32>
    %cst_7 = arith.constant dense<0.000000e+00> : vector<1xf32>
    %15 = vector.multi_reduction <add>, %1, %cst_7 [1] : vector<1x256xf32> to vector<1xf32>
    %16 = vector.shape_cast %15 : vector<1xf32> to vector<1x1xf32>
    %cst_8 = arith.constant 0.000000e+00 : f32
    %17 = vector.broadcast %cst_8 : f32 to vector<1x1xf32>
    %18 = arith.subf %17, %16 : vector<1x1xf32>
    %cst_9 = arith.constant 0.000000e+00 : f32
    %19 = vector.broadcast %cst_9 : f32 to vector<8x256xf32>
    %20 = arith.subf %19, %0 : vector<8x256xf32>
    %21 = tpu.reciprocal %10 : vector<1x256xf32> -> vector<1x256xf32>
    %22 = vector.broadcast %21 : vector<1x256xf32> to vector<8x256xf32>
    %23 = arith.mulf %20, %22 : vector<8x256xf32>
    %24 = arith.mulf %14, %14 : vector<8x256xf32>
    %cst_10 = arith.constant 1.000000e-01 : f32
    %25 = vector.broadcast %cst_10 : f32 to vector<8x256xf32>
    %26 = arith.mulf %25, %24 : vector<8x256xf32>
    %cst_11 = arith.constant 5.000000e-01 : f32
    %27 = vector.broadcast %cst_11 : f32 to vector<8x256xf32>
    %28 = arith.addf %27, %26 : vector<8x256xf32>
    %29 = arith.mulf %24, %28 : vector<8x256xf32>
    %cst_12 = arith.constant dense<0.000000e+00> : vector<8xf32>
    %30 = vector.multi_reduction <add>, %29, %cst_12 [1] : vector<8x256xf32> to vector<8xf32>
    %31 = vector.shape_cast %30 : vector<8xf32> to vector<8x1xf32>
    %cst_13 = arith.constant 4.000000e-01 : f32
    %32 = vector.broadcast %cst_13 : f32 to vector<8x256xf32>
    %33 = arith.mulf %32, %24 : vector<8x256xf32>
    %cst_14 = arith.constant 1.000000e+00 : f32
    %34 = vector.broadcast %cst_14 : f32 to vector<8x256xf32>
    %35 = arith.addf %34, %33 : vector<8x256xf32>
    %36 = arith.mulf %14, %35 : vector<8x256xf32>
    %37 = vector.broadcast %18 : vector<1x1xf32> to vector<8x1xf32>
    %38 = arith.addf %9, %37 : vector<8x1xf32>
    %39 = arith.addf %31, %38 : vector<8x1xf32>
    %cst_15 = arith.constant 0.000000e+00 : f32
    %40 = vector.broadcast %cst_15 : f32 to vector<8x1xf32>
    %41 = arith.subf %40, %39 : vector<8x1xf32>
    %c0_16 = arith.constant 0 : index
    %c0_17 = arith.constant 0 : index
    %42 = vector.load %arg4[%c0_16, %c0_17] : memref<8x1xf32, #tpu.memory_space<vmem>>, vector<8x1xf32>
    tpu.vector_store %arg4[%c0_16, %c0_17], %41 {strides = array<i32>} : memref<8x1xf32, #tpu.memory_space<vmem>>, vector<8x1xf32>,
    %c0_18 = arith.constant 0 : index
    %c0_19 = arith.constant 0 : index
    %43 = vector.load %arg5[%c0_18, %c0_19] : memref<8x1xf32, #tpu.memory_space<vmem>>, vector<8x1xf32>
    tpu.vector_store %arg5[%c0_18, %c0_19], %31 {strides = array<i32>} : memref<8x1xf32, #tpu.memory_space<vmem>>, vector<8x1xf32>,
    %44 = arith.addf %23, %36 : vector<8x256xf32>
    %45 = arith.mulf %14, %44 : vector<8x256xf32>
    %cst_20 = arith.constant dense<0.000000e+00> : vector<8xf32>
    %46 = vector.multi_reduction <add>, %45, %cst_20 [1] : vector<8x256xf32> to vector<8xf32>
    %47 = vector.shape_cast %46 : vector<8xf32> to vector<8x1xf32>
    %48 = vector.shape_cast %47 : vector<8x1xf32> to vector<1x8x1xf32>
    %cst_21 = arith.constant dense<0.000000e+00> : vector<1xf32>
    %49 = vector.multi_reduction <add>, %48, %cst_21 [1, 2] : vector<1x8x1xf32> to vector<1xf32>
    %50 = vector.shape_cast %49 : vector<1xf32> to vector<1x1x1xf32>
    %51 = vector.extract %50[0, 0, 0] : f32 from vector<1x1x1xf32>
    %52 = vector.broadcast %51 : f32 to vector<1x8x128xf32>
    %c0_22 = arith.constant 0 : index
    %c0_23 = arith.constant 0 : index
    %c0_24 = arith.constant 0 : index
    %53 = vector.load %arg6[%c0_22, %c0_23, %c0_24] : memref<1x8x128xf32, #tpu.memory_space<vmem>>, vector<1x8x128xf32>
    tpu.vector_store %arg6[%c0_22, %c0_23, %c0_24], %52 {strides = array<i32>} : memref<1x8x128xf32, #tpu.memory_space<vmem>>, vector<1x8x128xf32>,
    return
  }
  func.func @transform_0(%arg0: i32) -> (i32, i32) {
    %c0_i32 = arith.constant 0 : i32
    %c0_i32_0 = arith.constant 0 : i32
    return %arg0, %c0_i32 : i32, i32
  }
  func.func @transform_1(%arg0: i32) -> (i32, i32) {
    %c0_i32 = arith.constant 0 : i32
    %c0_i32_0 = arith.constant 0 : i32
    %c0_i32_1 = arith.constant 0 : i32
    return %c0_i32, %c0_i32_0 : i32, i32
  }
  func.func @transform_2(%arg0: i32) -> (i32, i32) {
    %c0_i32 = arith.constant 0 : i32
    %c0_i32_0 = arith.constant 0 : i32
    %c0_i32_1 = arith.constant 0 : i32
    return %c0_i32, %c0_i32_0 : i32, i32
  }
  func.func @transform_3(%arg0: i32) -> (i32, i32) {
    %c0_i32 = arith.constant 0 : i32
    %c0_i32_0 = arith.constant 0 : i32
    return %arg0, %c0_i32 : i32, i32
  }
  func.func @transform_4(%arg0: i32) -> (i32, i32) {
    %c0_i32 = arith.constant 0 : i32
    %c0_i32_0 = arith.constant 0 : i32
    return %arg0, %c0_i32 : i32, i32
  }
  func.func @transform_5(%arg0: i32) -> (i32, i32, i32) {
    %c0_i32 = arith.constant 0 : i32
    %c0_i32_0 = arith.constant 0 : i32
    %c0_i32_1 = arith.constant 0 : i32
    return %arg0, %c0_i32, %c0_i32_0 : i32, i32, i32
  }
}

</mosaic_0001>

<llo_original>
// kernel: tpu_custom_call.1
$region0: #{tpu_custom_call.1}
  #allocation0 [shape = 'u32[]', space=smem, size = 0x4, offset = 0x4, fixed_abs, tag = 'smem constant byte address 0x4 - core index']
  #allocation1 [shape = 'u32[144,128]{1,0:T(1,128)}', space=vmem, size = 0x12000, scoped, tag = 'internal scratch']
  %s0 = inlined_call_operand.hbm [shape: f32[8,256], index: 0, kind: input, shape index: {}]
  %s1 = inlined_call_operand.vmem [shape: f32[1,256], index: 1, kind: input, shape index: {}]
  %s2 = inlined_call_operand.vmem [shape: f32[1,256], index: 2, kind: input, shape index: {}]
  %s3 = inlined_call_operand.vmem [shape: f32[8,1], index: 3, kind: output, shape index: {0}]
  %s4 = inlined_call_operand.vmem [shape: f32[8,1], index: 4, kind: output, shape index: {1}]
  %s5 = inlined_call_operand.hbm [shape: f32[1,8,128], index: 5, kind: output, shape index: {2}]
  %6 = xla_tuple %s3, %s4, %s5
  %s7 = sld [smem:[#allocation0]]
  $region42: #{tpu_custom_call.1} parent=0
    _
  %s9 = ssub.s32 1, %s7
  %s10 = scalar_select 0, %s9, %s7
  $region1: #{tpu_custom_call.1} parent=0
    #allocation2 [shape = 'u8[8192]{0}', space=vmem, size = 0x2000, scoped, tag = 'input window, operand 0, single buffered']
    #allocation3 [shape = 's32[1]{0}', space=sflag, size = 0x4, scoped, tag = 'scoped memory for tpu_custom_call.1']
    #allocation4 [shape = 's32[1]{0}', space=sflag, size = 0x4, scoped, tag = 'scoped memory for tpu_custom_call.1']
    #allocation5 [shape = 'u8[4096]{0}', space=vmem, size = 0x1000, scoped, tag = 'output window, operand 2, single buffered']
    %11 = vsyncpa [#allocation3], 0
    %12 = vsyncpa [#allocation4], 0
    // Predicated region
    $region2: #{tpu_custom_call.1} parent=1 // pred_check
      _
    $region3: #{tpu_custom_call.1} parent=1 // pred_check_branch
      %14 = sbr.rel (0) target = $region5
    $region4: #{tpu_custom_call.1} parent=1 // pred_region
      %s16 = ssub.s32 256, 256
      %17 = vsyncadd [#allocation3], %s16
      %s19 = sshll.u32 [#allocation2], 4
      %s20 = int_to_ptr.vmem [resolvable:$true] %s19
      %22 = dma.hbm_to_vmem [thread:$0]  %s0, 256, %s20, [#allocation3]
    $region5: #{tpu_custom_call.1} parent=1 // pred_fallthru
      _
    // Predicated region
    $region6: #{tpu_custom_call.1} parent=1 // pred_check
      _
    $region7: #{tpu_custom_call.1} parent=1 // pred_check_branch
      %24 = sbr.rel (0) target = $region9
    $region8: #{tpu_custom_call.1} parent=1 // pred_region
      _
    $region9: #{tpu_custom_call.1} parent=1 // pred_fallthru
      _
    // Predicated region
    $region10: #{tpu_custom_call.1} parent=1 // pred_check
      _
    $region11: #{tpu_custom_call.1} parent=1 // pred_check_branch
      %26 = sbr.rel (0) target = $region13
    $region12: #{tpu_custom_call.1} parent=1 // pred_region
      _
    $region13: #{tpu_custom_call.1} parent=1 // pred_fallthru
      _
    // Predicated region
    $region14: #{tpu_custom_call.1} parent=1 // pred_check
      _
    $region15: #{tpu_custom_call.1} parent=1 // pred_check_branch
      %28 = sbr.rel (0) target = $region17
    $region16: #{tpu_custom_call.1} parent=1 // pred_region
      %29 = dma.done [#allocation3], 256
    $region17: #{tpu_custom_call.1} parent=1 // pred_fallthru
      _
    %v30 = vld [vmem:[#allocation2] sm:$0xff]
    %v31 = vld [vmem:[#allocation2 + $0x8] sm:$0xff]
    %v32 = vld [vmem:[%s1] sm:$0x3]
    %v33 = vld [vmem:[%s2] sm:$0x3]
    %v34 = vmul.f32 %v30, %v30
    %v35 = vmul.f32 %v31, %v31
    %v36 = vadd.f32 %v34, %v35
    %37 = vadd.xlane.f32.xlu0 %v36
    %v38 = vpop.xlane.xlu0 %37
    %v39 = vmul.f32 %v38, -0.5
    %v40 = vadd.f32 %v39, -235.24826
    %v41 = vmul.f32 %v32, 1.442695
    %v42 = vpow.pop %v41
    %v44 = vlaneseq
    %v45 = vshrl.u32 %v44, 7
    %v46 = vsub.s32 0, %v45
    %v47 = vrot.slane %v42, %v46
    %v48 = vlaneseq
    %v49 = vshrl.u32 %v48, 7
    %v50 = vsub.s32 1, %v49
    %v51 = vrot.slane %v42, %v50
    %v54 = vmul.f32 %v47, %v30
    %v55 = vmul.f32 %v51, %v31
    %v57 = vlaneseq
    %v58 = vshrl.u32 %v57, 7
    %v59 = vsub.s32 0, %v58
    %v60 = vrot.slane %v33, %v59
    %v61 = vlaneseq
    %v62 = vshrl.u32 %v61, 7
    %v63 = vsub.s32 1, %v62
    %v64 = vrot.slane %v33, %v63
    %v67 = vadd.f32 %v54, %v60
    %v68 = vadd.f32 %v55, %v64
    %v70 = vlaneseq
    %v71 = vshrl.u32 %v70, 7
    %v72 = vsub.s32 0, %v71
    %v73 = vrot.slane %v32, %v72
    %v74 = vlaneseq
    %v75 = vshrl.u32 %v74, 7
    %v76 = vsub.s32 1, %v75
    %v77 = vrot.slane %v32, %v76
    %vm80 = vcmask 1040384
    %v81 = vsel %vm80, %v73, 0.0
    %v82 = vsel %vm80, %v77, 0.0
    %v83 = vadd.f32 %v81, %v82
    %84 = vadd.xlane.f32.xlu0 %v83
    %v85 = vpop.xlane.xlu0 %84
    %v86 = vsub.f32 0.0, %v85
    %v87 = vsub.f32 0.0, %v30
    %v88 = vsub.f32 0.0, %v31
    %v89 = vrcp.pop %v42
    %v91 = vlaneseq
    %v92 = vshrl.u32 %v91, 7
    %v93 = vsub.s32 0, %v92
    %v94 = vrot.slane %v89, %v93
    %v95 = vlaneseq
    %v96 = vshrl.u32 %v95, 7
    %v97 = vsub.s32 1, %v96
    %v98 = vrot.slane %v89, %v97
    %v101 = vmul.f32 %v87, %v94
    %v102 = vmul.f32 %v88, %v98
    %v103 = vmul.f32 %v67, %v67
    %v104 = vmul.f32 %v68, %v68
    %v105 = vmul.f32 %v103, 0.1
    %v106 = vmul.f32 %v104, 0.1
    %v107 = vadd.f32 %v105, 0.5
    %v108 = vadd.f32 %v106, 0.5
    %v109 = vmul.f32 %v103, %v107
    %v110 = vmul.f32 %v104, %v108
    %v111 = vadd.f32 %v109, %v110
    %112 = vadd.xlane.f32.xlu0 %v111
    %v113 = vpop.xlane.xlu0 %112
    %v114 = vmul.f32 %v103, 0.4
    %v115 = vmul.f32 %v104, 0.4
    %v116 = vadd.f32 %v114, 1.0
    %v117 = vadd.f32 %v115, 1.0
    %v118 = vmul.f32 %v67, %v116
    %v119 = vmul.f32 %v68, %v117
    %v120 = vlaneseq
    %v121 = vshrl.u32 %v120, 7
    %v122 = vsub.s32 0, %v121
    %v123 = vrot.slane %v86, %v122
    %v124 = vadd.f32 %v40, %v123
    %v125 = vadd.f32 %v113, %v124
    %v126 = vsub.f32 0.0, %v125
    %vm127 = vcmask 7168
    %128 = vst.msk [vmem:[%s3] sm:$0xff] %vm127, %v126
    %129 = vst.msk [vmem:[%s4] sm:$0xff] %vm127, %v113
    %v130 = vadd.f32 %v101, %v118
    %v131 = vadd.f32 %v102, %v119
    %v132 = vmul.f32 %v67, %v130
    %v133 = vmul.f32 %v68, %v131
    %v134 = vadd.f32 %v132, %v133
    %135 = vadd.xlane.f32.xlu0 %v134
    %v136 = vpop.xlane.xlu0 %135
    %v137 = vsel %vm127, %v136, 0.0
    %138 = vadd.xlane.f32.xlu0 %v137
    %v139 = vpop.xlane.xlu0 %138
    %v140 = vrot.slane %v139, 4
    %v141 = vadd.f32 %v139, %v140
    %v142 = vrot.slane %v141, 2
    %v143 = vadd.f32 %v141, %v142
    %v144 = vrot.slane %v143, 1
    %v145 = vadd.f32 %v143, %v144
    %s146 = vtos %v145
    %v147 = vstv %s146
    %148 = vst [vmem:[#allocation5] sm:$0xff] %v147
    // Predicated region
    $region18: #{tpu_custom_call.1} parent=1 // pred_check
      _
    $region19: #{tpu_custom_call.1} parent=1 // pred_check_branch
      %150 = sbr.rel (0) target = $region21
    $region20: #{tpu_custom_call.1} parent=1 // pred_region
      _
    $region21: #{tpu_custom_call.1} parent=1 // pred_fallthru
      _
    // Predicated region
    $region22: #{tpu_custom_call.1} parent=1 // pred_check
      _
    $region23: #{tpu_custom_call.1} parent=1 // pred_check_branch
      %152 = sbr.rel (0) target = $region25
    $region24: #{tpu_custom_call.1} parent=1 // pred_region
      _
    $region25: #{tpu_custom_call.1} parent=1 // pred_fallthru
      _
    // Predicated region
    $region26: #{tpu_custom_call.1} parent=1 // pred_check
      _
    $region27: #{tpu_custom_call.1} parent=1 // pred_check_branch
      %154 = sbr.rel (0) target = $region29
    $region28: #{tpu_custom_call.1} parent=1 // pred_region
      %s156 = ssub.s32 128, 128
      %157 = vsyncadd [#allocation4], %s156
      %s159 = sshll.u32 [#allocation5], 4
      %s160 = int_to_ptr.vmem [resolvable:$true] %s159
      %162 = dma.vmem_to_hbm [thread:$0]  %s160, 128, %s5, [#allocation4]
    $region29: #{tpu_custom_call.1} parent=1 // pred_fallthru
      _
    // Predicated region
    $region30: #{tpu_custom_call.1} parent=1 // pred_check
      _
    $region31: #{tpu_custom_call.1} parent=1 // pred_check_branch
      %164 = sbr.rel (0) target = $region33
    $region32: #{tpu_custom_call.1} parent=1 // pred_region
      _
    $region33: #{tpu_custom_call.1} parent=1 // pred_fallthru
      _
    // Predicated region
    $region34: #{tpu_custom_call.1} parent=1 // pred_check
      _
    $region35: #{tpu_custom_call.1} parent=1 // pred_check_branch
      %166 = sbr.rel (0) target = $region37
    $region36: #{tpu_custom_call.1} parent=1 // pred_region
      _
    $region37: #{tpu_custom_call.1} parent=1 // pred_fallthru
      _
    // Predicated region
    $region38: #{tpu_custom_call.1} parent=1 // pred_check
      _
    $region39: #{tpu_custom_call.1} parent=1 // pred_check_branch
      %168 = sbr.rel (0) target = $region41
    $region40: #{tpu_custom_call.1} parent=1 // pred_region
      %169 = dma.done [#allocation4], 128
    $region41: #{tpu_custom_call.1} parent=1 // pred_fallthru
      _
    %170 = vsyncpa [#allocation3], 1
    %171 = vsyncpa [#allocation4], 1

</llo_original>
